<compile_context>
chip_gen: v5e
topology: v5e:2x2
jax: 0.10.0
libtpu: 0.0.40
codegen_flags: <defaults>
</compile_context>

<pallas_src>
import numpy as np
import jax
import jax.numpy as jnp
from jax.experimental import pallas as pl
from jax.experimental.pallas import tpu as pltpu


# ---------------------------------------------------------------------------
# Module configuration (mirrors the PyTorch __init__)
# ---------------------------------------------------------------------------
CAT_COLS = ['SEX', 'EDUCATION', 'MARRIAGE', 'PAY_0', 'PAY_2', 'PAY_3', 'PAY_4']
CONT_COLS = ['LIMIT_BAL', 'AGE', 'BILL_AMT1', 'BILL_AMT2', 'BILL_AMT3',
             'BILL_AMT4', 'BILL_AMT5', 'BILL_AMT6', 'PAY_AMT1', 'PAY_AMT2',
             'PAY_AMT3', 'PAY_AMT4', 'PAY_AMT5', 'PAY_AMT6']

# Synthetic cat_code_dict sizes (match the "default of credit card clients" data).
CAT_CODE_SIZES = {'SEX': 2, 'EDUCATION': 7, 'MARRIAGE': 4,
                  'PAY_0': 11, 'PAY_2': 11, 'PAY_3': 11, 'PAY_4': 11}
EMBED_DIMS = {k: min(5, v // 2) for k, v in CAT_CODE_SIZES.items()}
TOTAL_EMBED_DIM = sum(EMBED_DIMS[c] for c in CAT_COLS)          # = 26
N_CAT = len(CAT_COLS)                                           # = 7
N_CONT = len(CONT_COLS)                                         # = 14
N_PACK = N_CAT + N_CONT                                         # = 21 streamed columns
IN_FEATURES = TOTAL_EMBED_DIM + N_CONT                          # = 40
N_CLASSES = 2
HIDDEN1, HIDDEN2 = 64, 16

# Offsets of each categorical column inside the stacked (folded) code table.
CODE_OFFSETS = []
_off = 0
for _c in CAT_COLS:
    CODE_OFFSETS.append(_off)
    _off += CAT_CODE_SIZES[_c]
N_CODES = _off                                                  # = 57
N_CODES_PAD = 128                                               # one full lane width

# Constant tables for the single-compare one-hot build:
#   _COLSEL[c, l]      = 1 if lane l belongs to categorical column c (continuous rows all 0)
#   _LANE_LOCAL[0, l]  = l - offset(column owning l), or -1 for pad lanes (never matches)
_COLSEL_NP = np.zeros((N_PACK, N_CODES_PAD), np.float32)
_LANE_LOCAL_NP = np.full((1, N_CODES_PAD), -1.0, np.float32)
for _c_idx, (_col, _o) in enumerate(zip(CAT_COLS, CODE_OFFSETS)):
    _sz = CAT_CODE_SIZES[_col]
    _COLSEL_NP[_c_idx, _o:_o + _sz] = 1.0
    _LANE_LOCAL_NP[0, _o:_o + _sz] = np.arange(_sz, dtype=np.float32)
_CAT_SIZES_NP = np.array([CAT_CODE_SIZES[c] for c in CAT_COLS], np.int32)


def _round_up(x, m):
    return (x + m - 1) // m * m


def _vmem_capacity_bytes():
    try:
        return int(pltpu.get_tpu_info().vmem_capacity_bytes)
    except Exception:
        return 128 << 20                    # v5e / v6e physical VMEM

_VMEM_PHYS = _vmem_capacity_bytes()
# ~4 KiB of VMEM per batch row (lane-padded, double-buffered in/out blocks plus
# onehot / h1 intermediates): bigger tiles on 128 MiB chips, smaller on 64 MiB v7x.
TILE_B_MAX = 4096 if _VMEM_PHYS >= (128 << 20) else 2048
_VMEM_LIMIT_BYTES = int(min(40 << 20, _VMEM_PHYS // 2))
_SPLIT_THRESHOLD_ROWS = 1024                # force >= 2 grid steps above this (v7x megacore)


# ---------------------------------------------------------------------------
# Pallas kernel: fused one-hot embedding lookup + 3-layer MLP
# ---------------------------------------------------------------------------
def _fused_entity_mlp_kernel(x_ref, colsel_ref, lane_ref, efold_ref, w1p_ref,
                             b1_ref, w2_ref, b2_ref, w3_ref, b3_ref, o_ref):
    cdt = efold_ref.dtype                      # MXU-operand dtype for the big matmuls
    x = x_ref[...]                             # [tile_b, 21] f32 (7 codes + 14 cont)

    # --- one-hot embedding codes with ONE compare -----------------------------
    # Broadcast each row's code into the lanes of its column via a tiny constant
    # 0/1 selector matmul (continuous rows of the selector are zero), then compare
    # against the per-lane local index.  Pad lanes hold -1 and never match.
    # Exact: codes <= 10 and 0/1 selectors are exact in any float dtype.
    code_b = jnp.dot(x, colsel_ref[...], preferred_element_type=jnp.float32)
    onehot = (code_b == lane_ref[...]).astype(cdt)          # single ==, single cast

    # --- layer 1: folded embeddings (one MXU matmul) + continuous part --------
    # w1p has zero rows for the 7 code columns of x, so no in-kernel slicing is
    # needed; this matmul stays f32 because the continuous features are raw /
    # un-normalised (bf16 there would cost ~0.4% relative error).
    h1 = jnp.dot(onehot, efold_ref[...], preferred_element_type=jnp.float32)
    h1 = h1 + jnp.dot(x, w1p_ref[...], preferred_element_type=jnp.float32)
    h1 = jnp.maximum(h1 + b1_ref[...], 0.0)

    # --- layers 2 and 3 (f32 accumulation, bias + ReLU in f32) ----------------
    h2 = jnp.dot(h1.astype(cdt), w2_ref[...], preferred_element_type=jnp.float32)
    h2 = jnp.maximum(h2 + b2_ref[...], 0.0)
    out = jnp.dot(h2.astype(cdt), w3_ref[...], preferred_element_type=jnp.float32)
    o_ref[...] = (out + b3_ref[...]).astype(o_ref.dtype)


# ---------------------------------------------------------------------------
# One-time weight preparation (hoisted out of the per-call path; cacheable)
# ---------------------------------------------------------------------------
def prepare_params(params, compute_dtype=jnp.bfloat16):
    """Fold each embedding table through its rows of W1 (exact re-association of
    gather + concat + W1), pad to the 128-lane code axis, pack the continuous rows
    of W1 at their streamed-column positions, and cast MXU weights to compute_dtype.
    Cache the returned dict and pass it as `prepared=` to entity_embedding_forward
    when the same parameters are reused across calls."""
    hp = jax.lax.Precision.HIGHEST
    folded, r = [], 0
    for col in CAT_COLS:
        d = EMBED_DIMS[col]
        folded.append(jnp.dot(params['embeddings'][col].astype(jnp.float32),
                              params['w1'][r:r + d, :], precision=hp))
        r += d
    e_fold = jnp.concatenate(folded, axis=0)                          # [57, 64]
    e_fold = jnp.pad(e_fold, ((0, N_CODES_PAD - N_CODES), (0, 0)))    # [128, 64]

    # Continuous rows of W1 at their packed-column positions (code columns -> zeros).
    w1_pack = jnp.zeros((N_PACK, HIDDEN1), jnp.float32)
    w1_pack = w1_pack.at[N_CAT:, :].set(params['w1'][TOTAL_EMBED_DIM:, :])

    return {
        'compute_dtype': compute_dtype,
        'colsel': jnp.asarray(_COLSEL_NP),                 # [21, 128] f32 constant
        'lane_local': jnp.asarray(_LANE_LOCAL_NP),         # [1, 128]  f32 constant
        'e_fold': e_fold.astype(compute_dtype),            # [128, 64]
        'w1_pack': w1_pack,                                 # [21, 64] f32 (stays f32)
        'b1': params['b1'].astype(jnp.float32),
        'w2': params['w2'].astype(compute_dtype),
        'b2': params['b2'].astype(jnp.float32),
        'w3': params['w3'].astype(compute_dtype),
        'b3': params['b3'].astype(jnp.float32),
    }


# ---------------------------------------------------------------------------
# Forward pass wrapper
# ---------------------------------------------------------------------------
def entity_embedding_forward(params, cat_tensor, num_tensor,
                             compute_dtype=jnp.bfloat16, prepared=None):
    """cat_tensor: [B, 7] int, num_tensor: [B, 14] float -> [B, N_CLASSES] f32."""
    if prepared is None:
        prepared = prepare_params(params, compute_dtype)

    B = cat_tensor.shape[0]

    # Clamp codes to each column's valid range (PyTorch nn.Embedding would raise on
    # out-of-range; unclamped codes could alias into a neighbouring column's rows).
    sizes = jnp.asarray(_CAT_SIZES_NP)
    cat = jnp.clip(cat_tensor.astype(jnp.int32), 0, sizes - 1)

    # Pack codes + continuous features into ONE streamed [B, 21] f32 array so each
    # batch tile is a single DMA (codes <= 10 are exactly representable as floats).
    x = jnp.concatenate([cat.astype(jnp.float32),
                         num_tensor.astype(jnp.float32)], axis=1)

    # Near-equal batch tiles (multiple of 8) to minimise padding and step count;
    # force >= 2 grid steps for large B so both v7x TensorCores get work.
    n_tiles = max(1, pl.cdiv(B, TILE_B_MAX))
    if n_tiles < 2 and B >= _SPLIT_THRESHOLD_ROWS:
        n_tiles = 2
    tile_b = _round_up(pl.cdiv(B, n_tiles), 8)
    bp = n_tiles * tile_b
    if bp != B:
        x = jnp.pad(x, ((0, bp - B), (0, 0)))

    def resident(shape):
        return pl.BlockSpec(shape, lambda i: (0, 0))       # stays VMEM-resident

    out = pl.pallas_call(
        _fused_entity_mlp_kernel,
        out_shape=jax.ShapeDtypeStruct((bp, N_CLASSES), jnp.float32),
        grid=(n_tiles,),
        in_specs=[
            pl.BlockSpec((tile_b, N_PACK), lambda i: (i, 0)),  # streamed packed rows
            resident((N_PACK, N_CODES_PAD)),                   # column selector
            resident((1, N_CODES_PAD)),                        # per-lane local index
            resident((N_CODES_PAD, HIDDEN1)),                  # folded embeddings @ W1
            resident((N_PACK, HIDDEN1)),                       # W1 continuous rows (packed)
            resident((1, HIDDEN1)),                            # b1
            resident((HIDDEN1, HIDDEN2)),                      # W2
            resident((1, HIDDEN2)),                            # b2
            resident((HIDDEN2, N_CLASSES)),                    # W3
            resident((1, N_CLASSES)),                          # b3
        ],
        out_specs=pl.BlockSpec((tile_b, N_CLASSES), lambda i: (i, 0)),
        compiler_params=pltpu.CompilerParams(
            dimension_semantics=("parallel",),
            vmem_limit_bytes=_VMEM_LIMIT_BYTES),
    )(x, prepared['colsel'], prepared['lane_local'], prepared['e_fold'],
      prepared['w1_pack'], prepared['b1'], prepared['w2'], prepared['b2'],
      prepared['w3'], prepared['b3'])
    return out[:B]


# ---------------------------------------------------------------------------
# Parameter construction (deterministic, synthetic)
# ---------------------------------------------------------------------------
def init_params(key):
    keys = jax.random.split(key, len(CAT_COLS) + 6)
    params, emb = {}, {}
    for i, col in enumerate(CAT_COLS):   # nn.Embedding init ~ N(0, 1)
        emb[col] = jax.random.normal(
            keys[i], (CAT_CODE_SIZES[col], EMBED_DIMS[col]), dtype=jnp.float32)
    params['embeddings'] = emb

    def linear_init(kw, kb, fan_in, fan_out):
        bound = 1.0 / np.sqrt(fan_in)
        w = jax.random.uniform(kw, (fan_in, fan_out), jnp.float32, -bound, bound)
        b = jax.random.uniform(kb, (1, fan_out), jnp.float32, -bound, bound)
        return w, b

    k = len(CAT_COLS)
    params['w1'], params['b1'] = linear_init(keys[k + 0], keys[k + 1], IN_FEATURES, HIDDEN1)
    params['w2'], params['b2'] = linear_init(keys[k + 2], keys[k + 3], HIDDEN1, HIDDEN2)
    params['w3'], params['b3'] = linear_init(keys[k + 4], keys[k + 5], HIDDEN2, N_CLASSES)
    return params


# Pure-JAX reference (original gather/concat/MLP path) for correctness checking.
def reference_forward(params, cat_tensor, num_tensor):
    hp = jax.lax.Precision.HIGHEST
    group = [jnp.take(params['embeddings'][c], cat_tensor[:, i], axis=0)
             for i, c in enumerate(CAT_COLS)]
    x = jnp.concatenate(group + [num_tensor.astype(jnp.float32)], axis=1)
    h1 = jnp.maximum(jnp.dot(x, params['w1'], precision=hp) + params['b1'], 0.0)
    h2 = jnp.maximum(jnp.dot(h1, params['w2'], precision=hp) + params['b2'], 0.0)
    return jnp.dot(h2, params['w3'], precision=hp) + params['b3']


if __name__ == "__main__":
    key = jax.random.PRNGKey(0)
    kp, kc, kn = jax.random.split(key, 3)
    params = init_params(kp)

    B = 8
    kcs = jax.random.split(kc, len(CAT_COLS))
    cat_tensor = jnp.concatenate(
        [jax.random.randint(kcs[i], (B, 1), 0, CAT_CODE_SIZES[c], dtype=jnp.int32)
         for i, c in enumerate(CAT_COLS)], axis=1)                    # [B, 7] int32
    num_tensor = jax.random.normal(kn, (B, N_CONT), jnp.float32)      # [B, 14] f32

    ref = reference_forward(params, cat_tensor, num_tensor)

    # Exact-semantics path (f32 MXU operands everywhere).
    out_f32 = jax.block_until_ready(
        entity_embedding_forward(params, cat_tensor, num_tensor,
                                 compute_dtype=jnp.float32))
    assert out_f32.shape == (B, N_CLASSES)
    np.testing.assert_allclose(np.asarray(out_f32), np.asarray(ref),
                               rtol=1e-4, atol=1e-4)

    # Default fast path (bf16 folded-embedding / W2 / W3 operands, f32 accumulation,
    # f32 continuous-feature path), with the weight prep hoisted out and cached.
    prepared = prepare_params(params, compute_dtype=jnp.bfloat16)
    out_bf16 = jax.block_until_ready(
        entity_embedding_forward(params, cat_tensor, num_tensor, prepared=prepared))
    assert out_bf16.shape == (B, N_CLASSES)
    np.testing.assert_allclose(np.asarray(out_bf16), np.asarray(ref),
                               rtol=5e-2, atol=5e-2)

    # Multi-tile / padded-batch path (forces a 2-step "parallel" grid + row padding).
    B2 = 1030
    kc2, kn2 = jax.random.split(jax.random.PRNGKey(1), 2)
    kcs2 = jax.random.split(kc2, len(CAT_COLS))
    cat2 = jnp.concatenate(
        [jax.random.randint(kcs2[i], (B2, 1), 0, CAT_CODE_SIZES[c], dtype=jnp.int32)
         for i, c in enumerate(CAT_COLS)], axis=1)
    num2 = jax.random.normal(kn2, (B2, N_CONT), jnp.float32)
    ref2 = reference_forward(params, cat2, num2)
    out2 = jax.block_until_ready(
        entity_embedding_forward(params, cat2, num2, compute_dtype=jnp.float32))
    assert out2.shape == (B2, N_CLASSES)
    np.testing.assert_allclose(np.asarray(out2), np.asarray(ref2),
                               rtol=1e-4, atol=1e-4)

    print("KERNEL_OK")
</pallas_src>

<mosaic_0001>
module attributes {stable_mosaic.version = 11 : i64} {
  func.func @_fused_entity_mlp_kernel(%arg0: i32, %arg1: memref<8x21xf32, #tpu.memory_space<vmem>>, %arg2: memref<21x128xf32, #tpu.memory_space<vmem>>, %arg3: memref<1x128xf32, #tpu.memory_space<vmem>>, %arg4: memref<128x64xf32, #tpu.memory_space<vmem>>, %arg5: memref<21x64xf32, #tpu.memory_space<vmem>>, %arg6: memref<1x64xf32, #tpu.memory_space<vmem>>, %arg7: memref<64x16xf32, #tpu.memory_space<vmem>>, %arg8: memref<1x16xf32, #tpu.memory_space<vmem>>, %arg9: memref<16x2xf32, #tpu.memory_space<vmem>>, %arg10: memref<1x2xf32, #tpu.memory_space<vmem>>, %arg11: memref<8x2xf32, #tpu.memory_space<vmem>>) attributes {dimension_semantics = [#tpu.dimension_semantics<parallel>], iteration_bounds = array<i64: 1>, scalar_prefetch = 0 : i64, scratch_operands = 0 : i64, tpu.core_type = #tpu.core_type<tc>, window_params = [{transform_indices = @transform_0, window_bounds = array<i64: 8, 21>}, {pipeline_mode = #tpu.pipeline_mode<synchronous>, transform_indices = @transform_1, window_bounds = array<i64: 21, 128>}, {pipeline_mode = #tpu.pipeline_mode<synchronous>, transform_indices = @transform_2, window_bounds = array<i64: 1, 128>}, {pipeline_mode = #tpu.pipeline_mode<synchronous>, transform_indices = @transform_3, window_bounds = array<i64: 128, 64>}, {pipeline_mode = #tpu.pipeline_mode<synchronous>, transform_indices = @transform_4, window_bounds = array<i64: 21, 64>}, {pipeline_mode = #tpu.pipeline_mode<synchronous>, transform_indices = @transform_5, window_bounds = array<i64: 1, 64>}, {pipeline_mode = #tpu.pipeline_mode<synchronous>, transform_indices = @transform_6, window_bounds = array<i64: 64, 16>}, {pipeline_mode = #tpu.pipeline_mode<synchronous>, transform_indices = @transform_7, window_bounds = array<i64: 1, 16>}, {pipeline_mode = #tpu.pipeline_mode<synchronous>, transform_indices = @transform_8, window_bounds = array<i64: 16, 2>}, {pipeline_mode = #tpu.pipeline_mode<synchronous>, transform_indices = @transform_9, window_bounds = array<i64: 1, 2>}, {transform_indices = @transform_10, window_bounds = array<i64: 8, 2>}]} {
    %c0 = arith.constant 0 : index
    %c0_0 = arith.constant 0 : index
    %0 = vector.load %arg1[%c0, %c0_0] : memref<8x21xf32, #tpu.memory_space<vmem>>, vector<8x21xf32>
    %c0_1 = arith.constant 0 : index
    %c0_2 = arith.constant 0 : index
    %1 = vector.load %arg2[%c0_1, %c0_2] : memref<21x128xf32, #tpu.memory_space<vmem>>, vector<21x128xf32>
    %cst = arith.constant dense<0.000000e+00> : vector<8x128xf32>
    %2 = tpu.matmul %0, %1, %cst {dimension_numbers = #tpu.dot_dimension_numbers<[1], [0], [0], [1], [0, 0, 1, 1], [], []>} : vector<8x21xf32>, vector<21x128xf32>, vector<8x128xf32> -> vector<8x128xf32>
    %c0_3 = arith.constant 0 : index
    %c0_4 = arith.constant 0 : index
    %3 = vector.load %arg3[%c0_3, %c0_4] : memref<1x128xf32, #tpu.memory_space<vmem>>, vector<1x128xf32>
    %4 = vector.broadcast %3 : vector<1x128xf32> to vector<8x128xf32>
    %5 = arith.cmpf oeq, %2, %4 : vector<8x128xf32>
    %6 = arith.extui %5 : vector<8x128xi1> to vector<8x128xi32>
    %7 = arith.sitofp %6 : vector<8x128xi32> to vector<8x128xf32>
    %c0_5 = arith.constant 0 : index
    %c0_6 = arith.constant 0 : index
    %8 = vector.load %arg4[%c0_5, %c0_6] : memref<128x64xf32, #tpu.memory_space<vmem>>, vector<128x64xf32>
    %cst_7 = arith.constant dense<0.000000e+00> : vector<8x64xf32>
    %9 = tpu.matmul %7, %8, %cst_7 {dimension_numbers = #tpu.dot_dimension_numbers<[1], [0], [0], [1], [0, 0, 1, 1], [], []>} : vector<8x128xf32>, vector<128x64xf32>, vector<8x64xf32> -> vector<8x64xf32>
    %c0_8 = arith.constant 0 : index
    %c0_9 = arith.constant 0 : index
    %10 = vector.load %arg5[%c0_8, %c0_9] : memref<21x64xf32, #tpu.memory_space<vmem>>, vector<21x64xf32>
    %cst_10 = arith.constant dense<0.000000e+00> : vector<8x64xf32>
    %11 = tpu.matmul %0, %10, %cst_10 {dimension_numbers = #tpu.dot_dimension_numbers<[1], [0], [0], [1], [0, 0, 1, 1], [], []>} : vector<8x21xf32>, vector<21x64xf32>, vector<8x64xf32> -> vector<8x64xf32>
    %12 = arith.addf %9, %11 : vector<8x64xf32>
    %c0_11 = arith.constant 0 : index
    %c0_12 = arith.constant 0 : index
    %13 = vector.load %arg6[%c0_11, %c0_12] : memref<1x64xf32, #tpu.memory_space<vmem>>, vector<1x64xf32>
    %14 = vector.broadcast %13 : vector<1x64xf32> to vector<8x64xf32>
    %15 = arith.addf %12, %14 : vector<8x64xf32>
    %cst_13 = arith.constant 0.000000e+00 : f32
    %16 = vector.broadcast %cst_13 : f32 to vector<8x64xf32>
    %17 = arith.maximumf %15, %16 : vector<8x64xf32>
    %c0_14 = arith.constant 0 : index
    %c0_15 = arith.constant 0 : index
    %18 = vector.load %arg7[%c0_14, %c0_15] : memref<64x16xf32, #tpu.memory_space<vmem>>, vector<64x16xf32>
    %cst_16 = arith.constant dense<0.000000e+00> : vector<8x16xf32>
    %19 = tpu.matmul %17, %18, %cst_16 {dimension_numbers = #tpu.dot_dimension_numbers<[1], [0], [0], [1], [0, 0, 1, 1], [], []>} : vector<8x64xf32>, vector<64x16xf32>, vector<8x16xf32> -> vector<8x16xf32>
    %c0_17 = arith.constant 0 : index
    %c0_18 = arith.constant 0 : index
    %20 = vector.load %arg8[%c0_17, %c0_18] : memref<1x16xf32, #tpu.memory_space<vmem>>, vector<1x16xf32>
    %21 = vector.broadcast %20 : vector<1x16xf32> to vector<8x16xf32>
    %22 = arith.addf %19, %21 : vector<8x16xf32>
    %cst_19 = arith.constant 0.000000e+00 : f32
    %23 = vector.broadcast %cst_19 : f32 to vector<8x16xf32>
    %24 = arith.maximumf %22, %23 : vector<8x16xf32>
    %c0_20 = arith.constant 0 : index
    %c0_21 = arith.constant 0 : index
    %25 = vector.load %arg9[%c0_20, %c0_21] : memref<16x2xf32, #tpu.memory_space<vmem>>, vector<16x2xf32>
    %cst_22 = arith.constant dense<0.000000e+00> : vector<8x2xf32>
    %26 = tpu.matmul %24, %25, %cst_22 {dimension_numbers = #tpu.dot_dimension_numbers<[1], [0], [0], [1], [0, 0, 1, 1], [], []>} : vector<8x16xf32>, vector<16x2xf32>, vector<8x2xf32> -> vector<8x2xf32>
    %c0_23 = arith.constant 0 : index
    %c0_24 = arith.constant 0 : index
    %27 = vector.load %arg10[%c0_23, %c0_24] : memref<1x2xf32, #tpu.memory_space<vmem>>, vector<1x2xf32>
    %28 = vector.broadcast %27 : vector<1x2xf32> to vector<8x2xf32>
    %29 = arith.addf %26, %28 : vector<8x2xf32>
    %c0_25 = arith.constant 0 : index
    %c0_26 = arith.constant 0 : index
    %30 = vector.load %arg11[%c0_25, %c0_26] : memref<8x2xf32, #tpu.memory_space<vmem>>, vector<8x2xf32>
    tpu.vector_store %arg11[%c0_25, %c0_26], %29 {strides = array<i32>} : memref<8x2xf32, #tpu.memory_space<vmem>>, vector<8x2xf32>,
    return
  }
  func.func @transform_0(%arg0: i32) -> (i32, i32) {
    %c0_i32 = arith.constant 0 : i32
    %c0_i32_0 = arith.constant 0 : i32
    return %arg0, %c0_i32 : i32, i32
  }
  func.func @transform_1(%arg0: i32) -> (i32, i32) {
    %c0_i32 = arith.constant 0 : i32
    %c0_i32_0 = arith.constant 0 : i32
    %c0_i32_1 = arith.constant 0 : i32
    return %c0_i32, %c0_i32_0 : i32, i32
  }
  func.func @transform_2(%arg0: i32) -> (i32, i32) {
    %c0_i32 = arith.constant 0 : i32
    %c0_i32_0 = arith.constant 0 : i32
    %c0_i32_1 = arith.constant 0 : i32
    return %c0_i32, %c0_i32_0 : i32, i32
  }
  func.func @transform_3(%arg0: i32) -> (i32, i32) {
    %c0_i32 = arith.constant 0 : i32
    %c0_i32_0 = arith.constant 0 : i32
    %c0_i32_1 = arith.constant 0 : i32
    return %c0_i32, %c0_i32_0 : i32, i32
  }
  func.func @transform_4(%arg0: i32) -> (i32, i32) {
    %c0_i32 = arith.constant 0 : i32
    %c0_i32_0 = arith.constant 0 : i32
    %c0_i32_1 = arith.constant 0 : i32
    return %c0_i32, %c0_i32_0 : i32, i32
  }
  func.func @transform_5(%arg0: i32) -> (i32, i32) {
    %c0_i32 = arith.constant 0 : i32
    %c0_i32_0 = arith.constant 0 : i32
    %c0_i32_1 = arith.constant 0 : i32
    return %c0_i32, %c0_i32_0 : i32, i32
  }
  func.func @transform_6(%arg0: i32) -> (i32, i32) {
    %c0_i32 = arith.constant 0 : i32
    %c0_i32_0 = arith.constant 0 : i32
    %c0_i32_1 = arith.constant 0 : i32
    return %c0_i32, %c0_i32_0 : i32, i32
  }
  func.func @transform_7(%arg0: i32) -> (i32, i32) {
    %c0_i32 = arith.constant 0 : i32
    %c0_i32_0 = arith.constant 0 : i32
    %c0_i32_1 = arith.constant 0 : i32
    return %c0_i32, %c0_i32_0 : i32, i32
  }
  func.func @transform_8(%arg0: i32) -> (i32, i32) {
    %c0_i32 = arith.constant 0 : i32
    %c0_i32_0 = arith.constant 0 : i32
    %c0_i32_1 = arith.constant 0 : i32
    return %c0_i32, %c0_i32_0 : i32, i32
  }
  func.func @transform_9(%arg0: i32) -> (i32, i32) {
    %c0_i32 = arith.constant 0 : i32
    %c0_i32_0 = arith.constant 0 : i32
    %c0_i32_1 = arith.constant 0 : i32
    return %c0_i32, %c0_i32_0 : i32, i32
  }
  func.func @transform_10(%arg0: i32) -> (i32, i32) {
    %c0_i32 = arith.constant 0 : i32
    %c0_i32_0 = arith.constant 0 : i32
    return %arg0, %c0_i32 : i32, i32
  }
}

</mosaic_0001>

<llo_original>
// kernel: tpu_custom_call.1
$region0: #{tpu_custom_call.1}
  #allocation0 [shape = 'u32[]', space=smem, size = 0x4, offset = 0x4, fixed_abs, tag = 'smem constant byte address 0x4 - core index']
  #allocation1 [shape = 'u32[72,128]{1,0:T(1,128)}', space=vmem, size = 0x9000, scoped, tag = 'internal scratch']
  %s0 = inlined_call_operand.vmem [shape: f32[8,21], index: 0, kind: input, shape index: {}]
  %s1 = inlined_call_operand.vmem [shape: f32[21,128], index: 1, kind: input, shape index: {}]
  %s2 = inlined_call_operand.vmem [shape: f32[1,128], index: 2, kind: input, shape index: {}]
  %s3 = inlined_call_operand.vmem [shape: f32[128,64], index: 3, kind: input, shape index: {}]
  %s4 = inlined_call_operand.vmem [shape: f32[21,64], index: 4, kind: input, shape index: {}]
  %s5 = inlined_call_operand.vmem [shape: f32[1,64], index: 5, kind: input, shape index: {}]
  %s6 = inlined_call_operand.vmem [shape: f32[64,16], index: 6, kind: input, shape index: {}]
  %s7 = inlined_call_operand.vmem [shape: f32[1,16], index: 7, kind: input, shape index: {}]
  %s8 = inlined_call_operand.vmem [shape: f32[16,2], index: 8, kind: input, shape index: {}]
  %s9 = inlined_call_operand.vmem [shape: f32[1,2], index: 9, kind: input, shape index: {}]
  %s10 = inlined_call_operand.vmem [shape: f32[8,2], index: 10, kind: output, shape index: {}]
  %s11 = sld [smem:[#allocation0]]
  $region50: #{tpu_custom_call.1} parent=0
    _
  %s13 = ssub.s32 1, %s11
  %s14 = scalar_select 0, %s13, %s11
  // Predicated region
  $region2: #{tpu_custom_call.1} parent=0 // pred_check
    _
  $region3: #{tpu_custom_call.1} parent=0 // pred_check_branch
    %16 = sbr.rel (0) target = $region5
  $region4: #{tpu_custom_call.1} parent=0 // pred_region
    _
  $region5: #{tpu_custom_call.1} parent=0 // pred_fallthru
    _
  // Predicated region
  $region6: #{tpu_custom_call.1} parent=0 // pred_check
    _
  $region7: #{tpu_custom_call.1} parent=0 // pred_check_branch
    %18 = sbr.rel (0) target = $region9
  $region8: #{tpu_custom_call.1} parent=0 // pred_region
    _
  $region9: #{tpu_custom_call.1} parent=0 // pred_fallthru
    _
  // Predicated region
  $region10: #{tpu_custom_call.1} parent=0 // pred_check
    _
  $region11: #{tpu_custom_call.1} parent=0 // pred_check_branch
    %20 = sbr.rel (0) target = $region13
  $region12: #{tpu_custom_call.1} parent=0 // pred_region
    _
  $region13: #{tpu_custom_call.1} parent=0 // pred_fallthru
    _
  // Predicated region
  $region14: #{tpu_custom_call.1} parent=0 // pred_check
    _
  $region15: #{tpu_custom_call.1} parent=0 // pred_check_branch
    %22 = sbr.rel (0) target = $region17
  $region16: #{tpu_custom_call.1} parent=0 // pred_region
    _
  $region17: #{tpu_custom_call.1} parent=0 // pred_fallthru
    _
  // Predicated region
  $region18: #{tpu_custom_call.1} parent=0 // pred_check
    _
  $region19: #{tpu_custom_call.1} parent=0 // pred_check_branch
    %24 = sbr.rel (0) target = $region21
  $region20: #{tpu_custom_call.1} parent=0 // pred_region
    _
  $region21: #{tpu_custom_call.1} parent=0 // pred_fallthru
    _
  // Predicated region
  $region22: #{tpu_custom_call.1} parent=0 // pred_check
    _
  $region23: #{tpu_custom_call.1} parent=0 // pred_check_branch
    %26 = sbr.rel (0) target = $region25
  $region24: #{tpu_custom_call.1} parent=0 // pred_region
    _
  $region25: #{tpu_custom_call.1} parent=0 // pred_fallthru
    _
  // Predicated region
  $region26: #{tpu_custom_call.1} parent=0 // pred_check
    _
  $region27: #{tpu_custom_call.1} parent=0 // pred_check_branch
    %28 = sbr.rel (0) target = $region29
  $region28: #{tpu_custom_call.1} parent=0 // pred_region
    _
  $region29: #{tpu_custom_call.1} parent=0 // pred_fallthru
    _
  // Predicated region
  $region30: #{tpu_custom_call.1} parent=0 // pred_check
    _
  $region31: #{tpu_custom_call.1} parent=0 // pred_check_branch
    %30 = sbr.rel (0) target = $region33
  $region32: #{tpu_custom_call.1} parent=0 // pred_region
    _
  $region33: #{tpu_custom_call.1} parent=0 // pred_fallthru
    _
  // Predicated region
  $region34: #{tpu_custom_call.1} parent=0 // pred_check
    _
  $region35: #{tpu_custom_call.1} parent=0 // pred_check_branch
    %32 = sbr.rel (0) target = $region37
  $region36: #{tpu_custom_call.1} parent=0 // pred_region
    _
  $region37: #{tpu_custom_call.1} parent=0 // pred_fallthru
    _
  // Predicated region
  $region38: #{tpu_custom_call.1} parent=0 // pred_check
    _
  $region39: #{tpu_custom_call.1} parent=0 // pred_check_branch
    %34 = sbr.rel (0) target = $region41
  $region40: #{tpu_custom_call.1} parent=0 // pred_region
    _
  $region41: #{tpu_custom_call.1} parent=0 // pred_fallthru
    _
  %v35 = vld [vmem:[%s0] sm:$0xff]
  %v36 = vld [vmem:[%s1] sm:$0xff]
  %v37 = vld [vmem:[%s1 + $0x8] sm:$0xff]
  %v38 = vld [vmem:[%s1 + $0x10] sm:$0x1f]
  %vm39 = vcmask 171008
  %v41 = vsel %vm39, %v35, 0
  %vm43 = vcmask 1044480
  %v45 = vsel %vm43, %v38, 0
  %47 = vmatpush.msra.mxu0 0.0
  %48 = vmatpush.msra.mxu0 0.0
  %49 = vmatpush.msra.mxu0 0.0
  %50 = vmatpush.msra.mxu0 0.0
  %51 = vmatpush.msra.mxu0 0.0
  %52 = vmatpush.msra.mxu0 0.0
  %53 = vmatpush.msra.mxu0 0.0
  %54 = vmatpush.msra.mxu0 0.0
  %55 = vmatpush.msra.mxu0 0.0
  %56 = vmatpush.msra.mxu0 0.0
  %57 = vmatpush.msra.mxu0 0.0
  %58 = vmatpush.msra.mxu0 0.0
  %59 = vmatpush.msra.mxu0 0.0
  %60 = vmatpush.msra.mxu0 %v45
  %61 = vmatpush.msra.mxu0 %v37
  %62 = vmatpush.msra.mxu0 %v36
  %63 = vmatmul.f32.gmra.mxu0 %v41
  %v64 = vpop.f32.mrf.mxu0
  %v65 = vadd.f32 0.0, %v64
  %66 = vdwg.mxu0
  %v67 = vld [vmem:[%s2] sm:$0x1]
  %v69 = vperm.slane %v67, 0
  %vm71 = vcmp.eq.f32.partialorder %v65, %v69
  %v72 = vsel %vm71, 1, 0
  %v73 = vcvt.s32.f32 %v72
  %v74 = vld [vmem:[%s3] sm:$0xff]
  %v75 = vld [vmem:[%s3 + $0x8] sm:$0xff]
  %v76 = vld [vmem:[%s3 + $0x10] sm:$0xff]
  %v77 = vld [vmem:[%s3 + $0x18] sm:$0xff]
  %v78 = vld [vmem:[%s3 + $0x20] sm:$0xff]
  %v79 = vld [vmem:[%s3 + $0x28] sm:$0xff]
  %v80 = vld [vmem:[%s3 + $0x30] sm:$0xff]
  %v81 = vld [vmem:[%s3 + $0x38] sm:$0xff]
  %v82 = vld [vmem:[%s3 + $0x40] sm:$0xff]
  %v83 = vld [vmem:[%s3 + $0x48] sm:$0xff]
  %v84 = vld [vmem:[%s3 + $0x50] sm:$0xff]
  %v85 = vld [vmem:[%s3 + $0x58] sm:$0xff]
  %v86 = vld [vmem:[%s3 + $0x60] sm:$0xff]
  %v87 = vld [vmem:[%s3 + $0x68] sm:$0xff]
  %v88 = vld [vmem:[%s3 + $0x70] sm:$0xff]
  %v89 = vld [vmem:[%s3 + $0x78] sm:$0xff]
  %v90 = vld [vmem:[%s4] sm:$0xff]
  %v91 = vld [vmem:[%s4 + $0x8] sm:$0xff]
  %v92 = vld [vmem:[%s4 + $0x10] sm:$0x1f]
  %v94 = vsel %vm43, %v92, 0
  %96 = vmatpush.msra.mxu0 0.0
  %97 = vmatpush.msra.mxu0 0.0
  %98 = vmatpush.msra.mxu0 0.0
  %99 = vmatpush.msra.mxu0 0.0
  %100 = vmatpush.msra.mxu0 0.0
  %101 = vmatpush.msra.mxu0 0.0
  %102 = vmatpush.msra.mxu0 0.0
  %103 = vmatpush.msra.mxu0 0.0
  %104 = vmatpush.msra.mxu0 0.0
  %105 = vmatpush.msra.mxu0 0.0
  %106 = vmatpush.msra.mxu0 0.0
  %107 = vmatpush.msra.mxu0 0.0
  %108 = vmatpush.msra.mxu0 0.0
  %109 = vmatpush.msra.mxu0 %v94
  %110 = vmatpush.msra.mxu0 %v91
  %111 = vmatpush.msra.mxu0 %v90
  %112 = vmatmul.f32.gmra.mxu0 %v41
  %v113 = vpop.f32.mrf.mxu0
  %v114 = vadd.f32 0.0, %v113
  %115 = vdwg.mxu0
  %116 = vmatpush.msra.mxu0 %v89
  %117 = vmatpush.msra.mxu0 %v88
  %118 = vmatpush.msra.mxu0 %v87
  %119 = vmatpush.msra.mxu0 %v86
  %120 = vmatpush.msra.mxu0 %v85
  %121 = vmatpush.msra.mxu0 %v84
  %122 = vmatpush.msra.mxu0 %v83
  %123 = vmatpush.msra.mxu0 %v82
  %124 = vmatpush.msra.mxu0 %v81
  %125 = vmatpush.msra.mxu0 %v80
  %126 = vmatpush.msra.mxu0 %v79
  %127 = vmatpush.msra.mxu0 %v78
  %128 = vmatpush.msra.mxu0 %v77
  %129 = vmatpush.msra.mxu0 %v76
  %130 = vmatpush.msra.mxu0 %v75
  %131 = vmatpush.msra.mxu0 %v74
  %132 = vmatmul.f32.gmra.mxu0 %v73
  %v133 = vpop.f32.mrf.mxu0
  %v134 = vadd.f32 %v114, %v133
  %135 = vdwg.mxu0
  %v136 = vld [vmem:[%s5] sm:$0x1]
  %v138 = vperm.slane %v136, 0
  %v140 = vadd.f32 %v134, %v138
  %v141 = vmax.f32 %v140, 0.0
  %v142 = vld [vmem:[%s6] sm:$0xff]
  %v143 = vld [vmem:[%s6 + $0x8] sm:$0xff]
  %v144 = vld [vmem:[%s6 + $0x10] sm:$0xff]
  %v145 = vld [vmem:[%s6 + $0x18] sm:$0xff]
  %v146 = vld [vmem:[%s6 + $0x20] sm:$0xff]
  %v147 = vld [vmem:[%s6 + $0x28] sm:$0xff]
  %v148 = vld [vmem:[%s6 + $0x30] sm:$0xff]
  %v149 = vld [vmem:[%s6 + $0x38] sm:$0xff]
  %v150 = vld [vmem:[%s7] sm:$0x1]
  %v152 = vperm.slane %v150, 0
  %vm154 = vcmask 523264
  %v156 = vsel %vm154, %v141, 0
  %158 = vmatpush.msra.mxu0 0.0
  %159 = vmatpush.msra.mxu0 0.0
  %160 = vmatpush.msra.mxu0 0.0
  %161 = vmatpush.msra.mxu0 0.0
  %162 = vmatpush.msra.mxu0 0.0
  %163 = vmatpush.msra.mxu0 0.0
  %164 = vmatpush.msra.mxu0 0.0
  %165 = vmatpush.msra.mxu0 0.0
  %166 = vmatpush.msra.mxu0 %v149
  %167 = vmatpush.msra.mxu0 %v148
  %168 = vmatpush.msra.mxu0 %v147
  %169 = vmatpush.msra.mxu0 %v146
  %170 = vmatpush.msra.mxu0 %v145
  %171 = vmatpush.msra.mxu0 %v144
  %172 = vmatpush.msra.mxu0 %v143
  %173 = vmatpush.msra.mxu0 %v142
  %174 = vmatmul.f32.gmra.mxu0 %v156
  %v175 = vpop.f32.mrf.mxu0
  %v176 = vadd.f32 %v152, %v175
  %177 = vdwg.mxu0
  %v178 = vmax.f32 %v176, 0.0
  %v179 = vld [vmem:[%s8] sm:$0xff]
  %v180 = vld [vmem:[%s8 + $0x8] sm:$0xff]
  %v181 = vld [vmem:[%s9] sm:$0x1]
  %v183 = vperm.slane %v181, 0
  %vm185 = vcmask 130048
  %v187 = vsel %vm185, %v178, 0
  %189 = vmatpush.msra.mxu0 0.0
  %190 = vmatpush.msra.mxu0 0.0
  %191 = vmatpush.msra.mxu0 0.0
  %192 = vmatpush.msra.mxu0 0.0
  %193 = vmatpush.msra.mxu0 0.0
  %194 = vmatpush.msra.mxu0 0.0
  %195 = vmatpush.msra.mxu0 0.0
  %196 = vmatpush.msra.mxu0 0.0
  %197 = vmatpush.msra.mxu0 0.0
  %198 = vmatpush.msra.mxu0 0.0
  %199 = vmatpush.msra.mxu0 0.0
  %200 = vmatpush.msra.mxu0 0.0
  %201 = vmatpush.msra.mxu0 0.0
  %202 = vmatpush.msra.mxu0 0.0
  %203 = vmatpush.msra.mxu0 %v180
  %204 = vmatpush.msra.mxu0 %v179
  %205 = vmatmul.f32.gmra.mxu0 %v187
  %v206 = vpop.f32.mrf.mxu0
  %v207 = vadd.f32 %v183, %v206
  %208 = vdwg.mxu0
  %vm209 = vcmask 15360
  %210 = vst.msk [vmem:[%s10] sm:$0xff] %vm209, %v207
  // Predicated region
  $region42: #{tpu_custom_call.1} parent=0 // pred_check
    _
  $region43: #{tpu_custom_call.1} parent=0 // pred_check_branch
    %212 = sbr.rel (0) target = $region45
  $region44: #{tpu_custom_call.1} parent=0 // pred_region
    _
  $region45: #{tpu_custom_call.1} parent=0 // pred_fallthru
    _
  // Predicated region
  $region46: #{tpu_custom_call.1} parent=0 // pred_check
    _
  $region47: #{tpu_custom_call.1} parent=0 // pred_check_branch
    %214 = sbr.rel (0) target = $region49
  $region48: #{tpu_custom_call.1} parent=0 // pred_region
    _
  $region49: #{tpu_custom_call.1} parent=0 // pred_fallthru
    _

</llo_original>
